<compile_context>
chip_gen: v7x
topology: tpu7x:2x2x1
jax: 0.10.0
libtpu: 0.0.40
codegen_flags: <defaults>
</compile_context>

<pallas_src>
import functools

import jax
import jax.numpy as jnp
from jax.experimental import pallas as pl
from jax.experimental.pallas import tpu as pltpu

BN_EPS = 1e-5


def _mlp_kernel(x_ref, w0_ref, w1_ref, w2_ref, b01_ref, b2_ref, o_ref):
    """Fused eval-mode forward: Linear -> Linear -> ReLU -> (BN folded) -> Linear.

    Weights are bf16; accumulation and elementwise math are f32.
    """
    x = x_ref[...]
    if x.dtype != jnp.bfloat16:          # skip the cast if the producer is already bf16
        x = x.astype(jnp.bfloat16)

    # Layer 0: Linear(input_dim -> H)
    h = jnp.dot(x, w0_ref[...], preferred_element_type=jnp.float32)
    h = h + b01_ref[0:1, :]

    # Hidden layer: Linear(H -> H) + ReLU
    h = jnp.dot(h.astype(jnp.bfloat16), w1_ref[...],
                preferred_element_type=jnp.float32)
    h = jnp.maximum(h + b01_ref[1:2, :], 0.0)

    # BatchNorm1d (eval) is folded into W2/b2 in the wrapper. Dropout (eval) == identity.

    # Final layer: Linear(H -> output_dim), BN-folded weights/bias.
    y = jnp.dot(h.astype(jnp.bfloat16), w2_ref[...],
                preferred_element_type=jnp.float32)
    o_ref[...] = (y + b2_ref[...]).astype(o_ref.dtype)


def _round_up(n, m):
    return ((n + m - 1) // m) * m


def _vmem_capacity_bytes():
    """Per-TensorCore VMEM capacity; conservative 64 MiB fallback (v7x) if unknown."""
    try:
        cap = getattr(pltpu.get_tpu_info(), "vmem_capacity_bytes", None)
        if cap:
            return int(cap)
    except Exception:
        pass
    return 64 << 20


@functools.partial(jax.jit, static_argnames=("tile_b", "single_buffer_weights"))
def _forward(x, params, tile_b=None, single_buffer_weights=True):
    (w0, b0, w1, b1, gamma, beta, rmean, rvar, w2, b2) = params
    B, in_dim = x.shape
    H = w0.shape[1]
    out_dim = w2.shape[1]

    # Lane-dense (128) padding for the hidden / output feature axes.
    H_p = _round_up(H, 128)
    out_p = _round_up(out_dim, 128)

    # --- Fold eval-mode BatchNorm into the final Linear (exact, done in f32). ---
    scale = gamma * jax.lax.rsqrt(rvar + BN_EPS)          # (1, H)
    shift = beta - rmean * scale                          # (1, H)
    w2_f = w2 * scale.reshape(H, 1)                       # (H, out_dim)
    b2_f = shift @ w2 + b2                                # (1, out_dim)

    # --- Zero-pad weights/biases to lane-dense sizes (exact: padded rows/cols = 0). ---
    if H_p != H:
        w0 = jnp.pad(w0, ((0, 0), (0, H_p - H)))
        b0 = jnp.pad(b0, ((0, 0), (0, H_p - H)))
        b1 = jnp.pad(b1, ((0, 0), (0, H_p - H)))
        w1 = jnp.pad(w1, ((0, H_p - H), (0, H_p - H)))
        w2_f = jnp.pad(w2_f, ((0, H_p - H), (0, 0)))
    if out_p != out_dim:
        w2_f = jnp.pad(w2_f, ((0, 0), (0, out_p - out_dim)))
        b2_f = jnp.pad(b2_f, ((0, 0), (0, out_p - out_dim)))

    # --- bf16 weights for the MXU; biases stay f32 (added to f32 accumulators). ---
    w0_bf = w0.astype(jnp.bfloat16)
    w1_bf = w1.astype(jnp.bfloat16)
    w2_bf = w2_f.astype(jnp.bfloat16)
    b01 = jnp.concatenate([b0, b1], axis=0)               # (2, H_p) packed biases

    # --- VMEM accounting: single-buffered weights, double-buffered x/out tiles,
    #     f32 hidden intermediates + bf16 matmul-operand copies. ---
    vmem_cap = _vmem_capacity_bytes()
    x_bytes = x.dtype.itemsize
    weight_bytes = 2 * (in_dim * H_p + H_p * H_p + H_p * out_p)   # bf16
    bias_bytes = 4 * (2 * H_p + out_p)
    fixed_bytes = weight_bytes + bias_bytes

    def vmem_for(tb):
        io = 2 * tb * (x_bytes * in_dim + x_bytes * out_p)   # double-buffered tiles
        interm = tb * H_p * (4 + 2) * 2                      # f32 h + bf16 copies, 2 layers
        return fixed_bytes + io + interm

    budget = int(vmem_cap * 0.85) - (8 << 20)                # ~8 MiB headroom

    # --- Batch tiling: largest 128-multiple that fits the budget; keep >= 2 grid
    #     steps for B >= 256 so megacore (v7x, 2 TCs) gets both cores busy. ---
    if tile_b is None:
        if B <= 128:
            tile_b = B
        else:
            max_tb = min(1024, B)
            if B >= 256:
                max_tb = min(max_tb, (B + 1) // 2)
            tile_b = 128
            cand = (max_tb // 128) * 128
            while cand >= 128:
                if vmem_for(cand) <= budget:
                    tile_b = cand
                    break
                cand -= 128

    grid = pl.cdiv(B, tile_b)   # ragged last block is masked by Pallas (rows independent)

    def const_spec(shape):
        idx = lambda *_: (0,) * len(shape)
        if single_buffer_weights:
            try:
                # Block index never changes -> 1 buffer is enough; halves weight VMEM.
                return pl.BlockSpec(shape, idx, pipeline_mode=pl.Buffered(1))
            except TypeError:
                pass
        return pl.BlockSpec(shape, idx)

    grid_spec = pltpu.PrefetchScalarGridSpec(
        num_scalar_prefetch=0,
        grid=(grid,),
        in_specs=[
            pl.BlockSpec((tile_b, in_dim), lambda i: (i, 0)),   # x tile
            const_spec((in_dim, H_p)),                          # W0^T (bf16)
            const_spec((H_p, H_p)),                             # W1^T (bf16)
            const_spec((H_p, out_p)),                           # W2^T folded (bf16)
            const_spec((2, H_p)),                               # [b0; b1] (f32)
            const_spec((1, out_p)),                             # b2 folded (f32)
        ],
        out_specs=pl.BlockSpec((tile_b, out_p), lambda i: (i, 0)),
    )

    # --- Scheduler hints: cost estimate (weights fetched once) + HW-derived VMEM cap. ---
    flops = 2 * B * (in_dim * H_p + H_p * H_p + H_p * out_p)
    io_bytes = x_bytes * B * (in_dim + out_p)
    cost = pl.CostEstimate(flops=flops, transcendentals=0,
                           bytes_accessed=fixed_bytes + io_bytes)

    vmem_needed = vmem_for(tile_b) + (4 << 20)
    vmem_limit = int(min(int(vmem_cap * 0.9), max(32 << 20, vmem_needed)))

    out = pl.pallas_call(
        _mlp_kernel,
        out_shape=jax.ShapeDtypeStruct((B, out_p), x.dtype),
        grid_spec=grid_spec,
        cost_estimate=cost,
        compiler_params=pltpu.CompilerParams(
            dimension_semantics=("parallel",),
            vmem_limit_bytes=vmem_limit),
    )(x, w0_bf, w1_bf, w2_bf, b01, b2_f)

    if out_p != out_dim:
        out = out[:, :out_dim]
    return out


def simple_feed_forward_net(x, params, tile_b=None):
    """Eval-mode forward. x: (B, input_dim). Tries single-buffered resident weights
    first; falls back to default double-buffering if this JAX/Mosaic build rejects
    pipeline_mode on top-level pallas_call BlockSpecs (compile-time error only)."""
    try:
        return _forward(x, params, tile_b=tile_b, single_buffer_weights=True)
    except Exception:
        return _forward(x, params, tile_b=tile_b, single_buffer_weights=False)


def init_params(key, input_dim, hidden, output_dim):
    """Deterministic synthetic init (uniform, PyTorch-Linear-style bounds).

    Weights are stored pre-transposed: (in_features, out_features), float32.
    BatchNorm running stats / affine are non-trivial so the BN fold is exercised.
    """
    ks = jax.random.split(key, 10)

    def lin(kw, kb, fan_in, fan_out):
        bound = 1.0 / (fan_in ** 0.5)
        w_t = jax.random.uniform(kw, (fan_in, fan_out), jnp.float32, -bound, bound)
        b = jax.random.uniform(kb, (1, fan_out), jnp.float32, -bound, bound)
        return w_t, b

    w0, b0 = lin(ks[0], ks[1], input_dim, hidden)
    w1, b1 = lin(ks[2], ks[3], hidden, hidden)
    w2, b2 = lin(ks[4], ks[5], hidden, output_dim)

    gamma = jax.random.uniform(ks[6], (1, hidden), jnp.float32, 0.5, 1.5)
    beta = jax.random.uniform(ks[7], (1, hidden), jnp.float32, -0.5, 0.5)
    rmean = jax.random.uniform(ks[8], (1, hidden), jnp.float32, -0.5, 0.5)
    rvar = jax.random.uniform(ks[9], (1, hidden), jnp.float32, 0.5, 1.5)

    return (w0, b0, w1, b1, gamma, beta, rmean, rvar, w2, b2)


def reference_forward(x, params):
    """Pure-JAX f32 reference of the same eval-mode forward (for sanity check)."""
    (w0, b0, w1, b1, gamma, beta, rmean, rvar, w2, b2) = params
    h = x @ w0 + b0
    h = jnp.maximum(h @ w1 + b1, 0.0)
    h = (h - rmean) * jax.lax.rsqrt(rvar + BN_EPS) * gamma + beta
    return h @ w2 + b2


if __name__ == "__main__":
    # Small shapes: batch=16, input_dim=128, hidden=128, output_dim=128
    B, INPUT_DIM, HIDDEN, OUTPUT_DIM = 16, 128, 128, 128

    key = jax.random.PRNGKey(0)
    k_x, k_p = jax.random.split(key)
    x = jax.random.normal(k_x, (B, INPUT_DIM), jnp.float32)
    params = init_params(k_p, INPUT_DIM, HIDDEN, OUTPUT_DIM)

    y = simple_feed_forward_net(x, params)      # B=16 -> single grid step
    y = jax.block_until_ready(y)

    y_ref = reference_forward(x, params)
    assert y.shape == (B, OUTPUT_DIM)
    # bf16 MXU operands with f32 accumulation -> widened tolerance vs f32 reference.
    assert jnp.allclose(y, y_ref, atol=5e-2, rtol=5e-2), "mismatch vs reference"

    print("KERNEL_OK")
</pallas_src>

<mosaic_0001>
module attributes {stable_mosaic.version = 11 : i64} {
  func.func @_mlp_kernel(%arg0: i32, %arg1: memref<16x128xf32, #tpu.memory_space<vmem>>, %arg2: memref<128x128xbf16, #tpu.memory_space<vmem>>, %arg3: memref<128x128xbf16, #tpu.memory_space<vmem>>, %arg4: memref<128x128xbf16, #tpu.memory_space<vmem>>, %arg5: memref<2x128xf32, #tpu.memory_space<vmem>>, %arg6: memref<1x128xf32, #tpu.memory_space<vmem>>, %arg7: memref<16x128xf32, #tpu.memory_space<vmem>>) attributes {dimension_semantics = [#tpu.dimension_semantics<parallel>], iteration_bounds = array<i64: 1>, scalar_prefetch = 0 : i64, scratch_operands = 0 : i64, tpu.core_type = #tpu.core_type<tc>, window_params = [{transform_indices = @transform_0, window_bounds = array<i64: 16, 128>}, {pipeline_mode = #tpu.pipeline_mode<synchronous>, transform_indices = @transform_1, window_bounds = array<i64: 128, 128>}, {pipeline_mode = #tpu.pipeline_mode<synchronous>, transform_indices = @transform_2, window_bounds = array<i64: 128, 128>}, {pipeline_mode = #tpu.pipeline_mode<synchronous>, transform_indices = @transform_3, window_bounds = array<i64: 128, 128>}, {pipeline_mode = #tpu.pipeline_mode<synchronous>, transform_indices = @transform_4, window_bounds = array<i64: 2, 128>}, {pipeline_mode = #tpu.pipeline_mode<synchronous>, transform_indices = @transform_5, window_bounds = array<i64: 1, 128>}, {transform_indices = @transform_6, window_bounds = array<i64: 16, 128>}]} {
    %c0 = arith.constant 0 : index
    %c0_0 = arith.constant 0 : index
    %0 = vector.load %arg1[%c0, %c0_0] : memref<16x128xf32, #tpu.memory_space<vmem>>, vector<16x128xf32>
    %1 = arith.truncf %0 : vector<16x128xf32> to vector<16x128xbf16>
    %c0_1 = arith.constant 0 : index
    %c0_2 = arith.constant 0 : index
    %2 = vector.load %arg2[%c0_1, %c0_2] : memref<128x128xbf16, #tpu.memory_space<vmem>>, vector<128x128xbf16>
    %cst = arith.constant dense<0.000000e+00> : vector<16x128xf32>
    %3 = tpu.matmul %1, %2, %cst {dimension_numbers = #tpu.dot_dimension_numbers<[1], [0], [0], [1], [0, 0, 1, 1], [], []>} : vector<16x128xbf16>, vector<128x128xbf16>, vector<16x128xf32> -> vector<16x128xf32>
    %c0_3 = arith.constant 0 : index
    %c0_4 = arith.constant 0 : index
    %4 = vector.load %arg5[%c0_3, %c0_4] : memref<2x128xf32, #tpu.memory_space<vmem>>, vector<1x128xf32>
    %5 = vector.broadcast %4 : vector<1x128xf32> to vector<16x128xf32>
    %6 = arith.addf %3, %5 : vector<16x128xf32>
    %7 = arith.truncf %6 : vector<16x128xf32> to vector<16x128xbf16>
    %c0_5 = arith.constant 0 : index
    %c0_6 = arith.constant 0 : index
    %8 = vector.load %arg3[%c0_5, %c0_6] : memref<128x128xbf16, #tpu.memory_space<vmem>>, vector<128x128xbf16>
    %cst_7 = arith.constant dense<0.000000e+00> : vector<16x128xf32>
    %9 = tpu.matmul %7, %8, %cst_7 {dimension_numbers = #tpu.dot_dimension_numbers<[1], [0], [0], [1], [0, 0, 1, 1], [], []>} : vector<16x128xbf16>, vector<128x128xbf16>, vector<16x128xf32> -> vector<16x128xf32>
    %c1 = arith.constant 1 : index
    %c0_8 = arith.constant 0 : index
    %10 = vector.load %arg5[%c1, %c0_8] : memref<2x128xf32, #tpu.memory_space<vmem>>, vector<1x128xf32>
    %11 = vector.broadcast %10 : vector<1x128xf32> to vector<16x128xf32>
    %12 = arith.addf %9, %11 : vector<16x128xf32>
    %cst_9 = arith.constant 0.000000e+00 : f32
    %13 = vector.broadcast %cst_9 : f32 to vector<16x128xf32>
    %14 = arith.maximumf %12, %13 : vector<16x128xf32>
    %15 = arith.truncf %14 : vector<16x128xf32> to vector<16x128xbf16>
    %c0_10 = arith.constant 0 : index
    %c0_11 = arith.constant 0 : index
    %16 = vector.load %arg4[%c0_10, %c0_11] : memref<128x128xbf16, #tpu.memory_space<vmem>>, vector<128x128xbf16>
    %cst_12 = arith.constant dense<0.000000e+00> : vector<16x128xf32>
    %17 = tpu.matmul %15, %16, %cst_12 {dimension_numbers = #tpu.dot_dimension_numbers<[1], [0], [0], [1], [0, 0, 1, 1], [], []>} : vector<16x128xbf16>, vector<128x128xbf16>, vector<16x128xf32> -> vector<16x128xf32>
    %c0_13 = arith.constant 0 : index
    %c0_14 = arith.constant 0 : index
    %18 = vector.load %arg6[%c0_13, %c0_14] : memref<1x128xf32, #tpu.memory_space<vmem>>, vector<1x128xf32>
    %19 = vector.broadcast %18 : vector<1x128xf32> to vector<16x128xf32>
    %20 = arith.addf %17, %19 : vector<16x128xf32>
    %c0_15 = arith.constant 0 : index
    %c0_16 = arith.constant 0 : index
    %21 = vector.load %arg7[%c0_15, %c0_16] : memref<16x128xf32, #tpu.memory_space<vmem>>, vector<16x128xf32>
    tpu.vector_store %arg7[%c0_15, %c0_16], %20 {strides = array<i32>} : memref<16x128xf32, #tpu.memory_space<vmem>>, vector<16x128xf32>,
    return
  }
  func.func @transform_0(%arg0: i32) -> (i32, i32) {
    %c0_i32 = arith.constant 0 : i32
    %c0_i32_0 = arith.constant 0 : i32
    return %arg0, %c0_i32 : i32, i32
  }
  func.func @transform_1(%arg0: i32) -> (i32, i32) {
    %c0_i32 = arith.constant 0 : i32
    %c0_i32_0 = arith.constant 0 : i32
    %c0_i32_1 = arith.constant 0 : i32
    return %c0_i32, %c0_i32_0 : i32, i32
  }
  func.func @transform_2(%arg0: i32) -> (i32, i32) {
    %c0_i32 = arith.constant 0 : i32
    %c0_i32_0 = arith.constant 0 : i32
    %c0_i32_1 = arith.constant 0 : i32
    return %c0_i32, %c0_i32_0 : i32, i32
  }
  func.func @transform_3(%arg0: i32) -> (i32, i32) {
    %c0_i32 = arith.constant 0 : i32
    %c0_i32_0 = arith.constant 0 : i32
    %c0_i32_1 = arith.constant 0 : i32
    return %c0_i32, %c0_i32_0 : i32, i32
  }
  func.func @transform_4(%arg0: i32) -> (i32, i32) {
    %c0_i32 = arith.constant 0 : i32
    %c0_i32_0 = arith.constant 0 : i32
    %c0_i32_1 = arith.constant 0 : i32
    return %c0_i32, %c0_i32_0 : i32, i32
  }
  func.func @transform_5(%arg0: i32) -> (i32, i32) {
    %c0_i32 = arith.constant 0 : i32
    %c0_i32_0 = arith.constant 0 : i32
    %c0_i32_1 = arith.constant 0 : i32
    return %c0_i32, %c0_i32_0 : i32, i32
  }
  func.func @transform_6(%arg0: i32) -> (i32, i32) {
    %c0_i32 = arith.constant 0 : i32
    %c0_i32_0 = arith.constant 0 : i32
    return %arg0, %c0_i32 : i32, i32
  }
}

module attributes {stable_mosaic.version = 11 : i64} {
  func.func @_mlp_kernel(%arg0: i32, %arg1: memref<16x128xf32, #tpu.memory_space<vmem>>, %arg2: memref<128x128xbf16, #tpu.memory_space<vmem>>, %arg3: memref<128x128xbf16, #tpu.memory_space<vmem>>, %arg4: memref<128x128xbf16, #tpu.memory_space<vmem>>, %arg5: memref<2x128xf32, #tpu.memory_space<vmem>>, %arg6: memref<1x128xf32, #tpu.memory_space<vmem>>, %arg7: memref<16x128xf32, #tpu.memory_space<vmem>>) attributes {dimension_semantics = [#tpu.dimension_semantics<parallel>], iteration_bounds = array<i64: 1>, scalar_prefetch = 0 : i64, scratch_operands = 0 : i64, tpu.core_type = #tpu.core_type<tc>, window_params = [{transform_indices = @transform_0, window_bounds = array<i64: 16, 128>}, {pipeline_mode = #tpu.pipeline_mode<synchronous>, transform_indices = @transform_1, window_bounds = array<i64: 128, 128>}, {pipeline_mode = #tpu.pipeline_mode<synchronous>, transform_indices = @transform_2, window_bounds = array<i64: 128, 128>}, {pipeline_mode = #tpu.pipeline_mode<synchronous>, transform_indices = @transform_3, window_bounds = array<i64: 128, 128>}, {pipeline_mode = #tpu.pipeline_mode<synchronous>, transform_indices = @transform_4, window_bounds = array<i64: 2, 128>}, {pipeline_mode = #tpu.pipeline_mode<synchronous>, transform_indices = @transform_5, window_bounds = array<i64: 1, 128>}, {transform_indices = @transform_6, window_bounds = array<i64: 16, 128>}]} {
    %c0 = arith.constant 0 : index
    %c0_0 = arith.constant 0 : index
    %0 = vector.load %arg1[%c0, %c0_0] : memref<16x128xf32, #tpu.memory_space<vmem>>, vector<16x128xf32>
    %1 = arith.truncf %0 : vector<16x128xf32> to vector<16x128xbf16>
    %c0_1 = arith.constant 0 : index
    %c0_2 = arith.constant 0 : index
    %2 = vector.load %arg2[%c0_1, %c0_2] : memref<128x128xbf16, #tpu.memory_space<vmem>>, vector<128x128xbf16>
    %cst = arith.constant dense<0.000000e+00> : vector<16x128xf32>
    %3 = tpu.matmul %1, %2, %cst {dimension_numbers = #tpu.dot_dimension_numbers<[1], [0], [0], [1], [0, 0, 1, 1], [], []>} : vector<16x128xbf16>, vector<128x128xbf16>, vector<16x128xf32> -> vector<16x128xf32>
    %c0_3 = arith.constant 0 : index
    %c0_4 = arith.constant 0 : index
    %4 = vector.load %arg5[%c0_3, %c0_4] : memref<2x128xf32, #tpu.memory_space<vmem>>, vector<1x128xf32>
    %5 = vector.broadcast %4 : vector<1x128xf32> to vector<16x128xf32>
    %6 = arith.addf %3, %5 : vector<16x128xf32>
    %7 = arith.truncf %6 : vector<16x128xf32> to vector<16x128xbf16>
    %c0_5 = arith.constant 0 : index
    %c0_6 = arith.constant 0 : index
    %8 = vector.load %arg3[%c0_5, %c0_6] : memref<128x128xbf16, #tpu.memory_space<vmem>>, vector<128x128xbf16>
    %cst_7 = arith.constant dense<0.000000e+00> : vector<16x128xf32>
    %9 = tpu.matmul %7, %8, %cst_7 {dimension_numbers = #tpu.dot_dimension_numbers<[1], [0], [0], [1], [0, 0, 1, 1], [], []>} : vector<16x128xbf16>, vector<128x128xbf16>, vector<16x128xf32> -> vector<16x128xf32>
    %c1 = arith.constant 1 : index
    %c0_8 = arith.constant 0 : index
    %10 = vector.load %arg5[%c1, %c0_8] : memref<2x128xf32, #tpu.memory_space<vmem>>, vector<1x128xf32>
    %11 = vector.broadcast %10 : vector<1x128xf32> to vector<16x128xf32>
    %12 = arith.addf %9, %11 : vector<16x128xf32>
    %cst_9 = arith.constant 0.000000e+00 : f32
    %13 = vector.broadcast %cst_9 : f32 to vector<16x128xf32>
    %14 = arith.maximumf %12, %13 : vector<16x128xf32>
    %15 = arith.truncf %14 : vector<16x128xf32> to vector<16x128xbf16>
    %c0_10 = arith.constant 0 : index
    %c0_11 = arith.constant 0 : index
    %16 = vector.load %arg4[%c0_10, %c0_11] : memref<128x128xbf16, #tpu.memory_space<vmem>>, vector<128x128xbf16>
    %cst_12 = arith.constant dense<0.000000e+00> : vector<16x128xf32>
    %17 = tpu.matmul %15, %16, %cst_12 {dimension_numbers = #tpu.dot_dimension_numbers<[1], [0], [0], [1], [0, 0, 1, 1], [], []>} : vector<16x128xbf16>, vector<128x128xbf16>, vector<16x128xf32> -> vector<16x128xf32>
    %c0_13 = arith.constant 0 : index
    %c0_14 = arith.constant 0 : index
    %18 = vector.load %arg6[%c0_13, %c0_14] : memref<1x128xf32, #tpu.memory_space<vmem>>, vector<1x128xf32>
    %19 = vector.broadcast %18 : vector<1x128xf32> to vector<16x128xf32>
    %20 = arith.addf %17, %19 : vector<16x128xf32>
    %c0_15 = arith.constant 0 : index
    %c0_16 = arith.constant 0 : index
    %21 = vector.load %arg7[%c0_15, %c0_16] : memref<16x128xf32, #tpu.memory_space<vmem>>, vector<16x128xf32>
    tpu.vector_store %arg7[%c0_15, %c0_16], %20 {strides = array<i32>} : memref<16x128xf32, #tpu.memory_space<vmem>>, vector<16x128xf32>,
    return
  }
  func.func @transform_0(%arg0: i32) -> (i32, i32) {
    %c0_i32 = arith.constant 0 : i32
    %c0_i32_0 = arith.constant 0 : i32
    return %arg0, %c0_i32 : i32, i32
  }
  func.func @transform_1(%arg0: i32) -> (i32, i32) {
    %c0_i32 = arith.constant 0 : i32
    %c0_i32_0 = arith.constant 0 : i32
    %c0_i32_1 = arith.constant 0 : i32
    return %c0_i32, %c0_i32_0 : i32, i32
  }
  func.func @transform_2(%arg0: i32) -> (i32, i32) {
    %c0_i32 = arith.constant 0 : i32
    %c0_i32_0 = arith.constant 0 : i32
    %c0_i32_1 = arith.constant 0 : i32
    return %c0_i32, %c0_i32_0 : i32, i32
  }
  func.func @transform_3(%arg0: i32) -> (i32, i32) {
    %c0_i32 = arith.constant 0 : i32
    %c0_i32_0 = arith.constant 0 : i32
    %c0_i32_1 = arith.constant 0 : i32
    return %c0_i32, %c0_i32_0 : i32, i32
  }
  func.func @transform_4(%arg0: i32) -> (i32, i32) {
    %c0_i32 = arith.constant 0 : i32
    %c0_i32_0 = arith.constant 0 : i32
    %c0_i32_1 = arith.constant 0 : i32
    return %c0_i32, %c0_i32_0 : i32, i32
  }
  func.func @transform_5(%arg0: i32) -> (i32, i32) {
    %c0_i32 = arith.constant 0 : i32
    %c0_i32_0 = arith.constant 0 : i32
    %c0_i32_1 = arith.constant 0 : i32
    return %c0_i32, %c0_i32_0 : i32, i32
  }
  func.func @transform_6(%arg0: i32) -> (i32, i32) {
    %c0_i32 = arith.constant 0 : i32
    %c0_i32_0 = arith.constant 0 : i32
    return %arg0, %c0_i32 : i32, i32
  }
}

</mosaic_0001>

<llo_original>
// kernel: _forward.1
$region0: #{_forward.1}
  #allocation0 [shape = 'u32[]', space=smem, size = 0x4, offset = 0x4, fixed_abs, tag = 'smem constant byte address 0x4 - core index']
  #allocation1 [shape = 'u32[144,128]{1,0:T(1,128)}', space=vmem, size = 0x12000, scoped, tag = 'internal scratch']
  %s0 = inlined_call_operand.vmem [shape: f32[16,128], index: 0, kind: input, shape index: {}]
  %s1 = inlined_call_operand.vmem [shape: bf16[128,128], index: 1, kind: input, shape index: {}]
  %s2 = inlined_call_operand.vmem [shape: bf16[128,128], index: 2, kind: input, shape index: {}]
  %s3 = inlined_call_operand.vmem [shape: bf16[128,128], index: 3, kind: input, shape index: {}]
  %s4 = inlined_call_operand.vmem [shape: f32[2,128], index: 4, kind: input, shape index: {}]
  %s5 = inlined_call_operand.vmem [shape: f32[1,128], index: 5, kind: input, shape index: {}]
  %s6 = inlined_call_operand.hbm [shape: f32[16,128], index: 6, kind: output, shape index: {}]
  %s7 = sld [smem:[#allocation0]]
  $region34: #{_forward.1} parent=0
    _
  %s9 = ssub.s32 1, %s7
  %s10 = scalar_select 0, %s9, %s7
  $region1: #{_forward.1} parent=0
    #allocation2 [shape = 'u8[8192]{0}', space=vmem, size = 0x2000, scoped, tag = 'output window, operand 0, single buffered']
    #allocation3 [shape = 's32[1]{0}', space=sflag, size = 0x4, scoped, tag = 'scoped memory for _forward.1']
    %11 = vsyncpa [#allocation3], 0
    // Predicated region
    $region2: #{_forward.1} parent=1 // pred_check
      _
    $region3: #{_forward.1} parent=1 // pred_check_branch
      %13 = sbr.rel (0) target = $region5
    $region4: #{_forward.1} parent=1 // pred_region
      _
    $region5: #{_forward.1} parent=1 // pred_fallthru
      _
    // Predicated region
    $region6: #{_forward.1} parent=1 // pred_check
      _
    $region7: #{_forward.1} parent=1 // pred_check_branch
      %15 = sbr.rel (0) target = $region9
    $region8: #{_forward.1} parent=1 // pred_region
      _
    $region9: #{_forward.1} parent=1 // pred_fallthru
      _
    // Predicated region
    $region10: #{_forward.1} parent=1 // pred_check
      _
    $region11: #{_forward.1} parent=1 // pred_check_branch
      %17 = sbr.rel (0) target = $region13
    $region12: #{_forward.1} parent=1 // pred_region
      _
    $region13: #{_forward.1} parent=1 // pred_fallthru
      _
    // Predicated region
    $region14: #{_forward.1} parent=1 // pred_check
      _
    $region15: #{_forward.1} parent=1 // pred_check_branch
      %19 = sbr.rel (0) target = $region17
    $region16: #{_forward.1} parent=1 // pred_region
      _
    $region17: #{_forward.1} parent=1 // pred_fallthru
      _
    // Predicated region
    $region18: #{_forward.1} parent=1 // pred_check
      _
    $region19: #{_forward.1} parent=1 // pred_check_branch
      %21 = sbr.rel (0) target = $region21
    $region20: #{_forward.1} parent=1 // pred_region
      _
    $region21: #{_forward.1} parent=1 // pred_fallthru
      _
    // Predicated region
    $region22: #{_forward.1} parent=1 // pred_check
      _
    $region23: #{_forward.1} parent=1 // pred_check_branch
      %23 = sbr.rel (0) target = $region25
    $region24: #{_forward.1} parent=1 // pred_region
      _
    $region25: #{_forward.1} parent=1 // pred_fallthru
      _
    %v25 = vld [vmem:[%s0] sm:$0xff]
    %v26 = vld [vmem:[%s0 + $0x8] sm:$0xff]
    %v27 = vpack.c.bf16 %v26, %v25
    %v28 = vld [vmem:[%s1] sm:$0xf]
    %v29 = vld [vmem:[%s1 + $0x4] sm:$0xf]
    %v30 = vld [vmem:[%s1 + $0x8] sm:$0xf]
    %v31 = vld [vmem:[%s1 + $0xc] sm:$0xf]
    %v32 = vld [vmem:[%s1 + $0x10] sm:$0xf]
    %v33 = vld [vmem:[%s1 + $0x14] sm:$0xf]
    %v34 = vld [vmem:[%s1 + $0x18] sm:$0xf]
    %v35 = vld [vmem:[%s1 + $0x1c] sm:$0xf]
    %v36 = vld [vmem:[%s1 + $0x20] sm:$0xf]
    %v37 = vld [vmem:[%s1 + $0x24] sm:$0xf]
    %v38 = vld [vmem:[%s1 + $0x28] sm:$0xf]
    %v39 = vld [vmem:[%s1 + $0x2c] sm:$0xf]
    %v40 = vld [vmem:[%s1 + $0x30] sm:$0xf]
    %v41 = vld [vmem:[%s1 + $0x34] sm:$0xf]
    %v42 = vld [vmem:[%s1 + $0x38] sm:$0xf]
    %v43 = vld [vmem:[%s1 + $0x3c] sm:$0xf]
    %v44 = vld [vmem:[%s4] sm:$0x1]
    %v45 = vlaneseq
    %v46 = vshrl.u32 %v45, 7
    %v47 = vsub.s32 0, %v46
    %v48 = vrot.slane %v44, %v47
    %v65 = vunpack.c.l.b16 %v28
    %v66 = vunpack.c.l.b16 %v29
    %v67 = vunpack.c.l.b16 %v30
    %v68 = vunpack.c.l.b16 %v31
    %v69 = vunpack.c.l.b16 %v32
    %v70 = vunpack.c.l.b16 %v33
    %v71 = vunpack.c.l.b16 %v34
    %v72 = vunpack.c.l.b16 %v35
    %v73 = vunpack.c.l.b16 %v36
    %v74 = vunpack.c.l.b16 %v37
    %v75 = vunpack.c.l.b16 %v38
    %v76 = vunpack.c.l.b16 %v39
    %v77 = vunpack.c.l.b16 %v40
    %v78 = vunpack.c.l.b16 %v41
    %v79 = vunpack.c.l.b16 %v42
    %v80 = vunpack.c.l.b16 %v43
    %v81 = vpack.c.b16 %v66, %v65
    %v82 = vpack.c.b16 %v68, %v67
    %v83 = vpack.c.b16 %v70, %v69
    %v84 = vpack.c.b16 %v72, %v71
    %v85 = vpack.c.b16 %v74, %v73
    %v86 = vpack.c.b16 %v76, %v75
    %v87 = vpack.c.b16 %v78, %v77
    %v88 = vpack.c.b16 %v80, %v79
    %97 = vmatprep.subr.bf16.mxu0 0
    %98 = vmatpush1.bf16.msra.mxu0 %v81
    %99 = vmatprep.subr.bf16.mxu0 0
    %100 = vmatpush1.bf16.msra.mxu0 %v82
    %101 = vmatprep.subr.bf16.mxu0 0
    %102 = vmatpush1.bf16.msra.mxu0 %v83
    %103 = vmatprep.subr.bf16.mxu0 0
    %104 = vmatpush1.bf16.msra.mxu0 %v84
    %105 = vmatprep.subr.bf16.mxu0 0
    %106 = vmatpush1.bf16.msra.mxu0 %v85
    %107 = vmatprep.subr.bf16.mxu0 0
    %108 = vmatpush1.bf16.msra.mxu0 %v86
    %109 = vmatprep.subr.bf16.mxu0 0
    %110 = vmatpush1.bf16.msra.mxu0 %v87
    %111 = vmatprep.subr.bf16.mxu0 0
    %112 = vmatpush1.bf16.msra.mxu0 %v88
    %113 = vmatprep.subr.bf16.mxu0 0
    %114 = vmatpush1.bf16.msra.mxu0 0
    %115 = vmatprep.subr.bf16.mxu0 0
    %116 = vmatpush1.bf16.msra.mxu0 0
    %117 = vmatprep.subr.bf16.mxu0 0
    %118 = vmatpush1.bf16.msra.mxu0 0
    %119 = vmatprep.subr.bf16.mxu0 0
    %120 = vmatpush1.bf16.msra.mxu0 0
    %121 = vmatprep.subr.bf16.mxu0 0
    %122 = vmatpush1.bf16.msra.mxu0 0
    %123 = vmatprep.subr.bf16.mxu0 0
    %124 = vmatpush1.bf16.msra.mxu0 0
    %125 = vmatprep.subr.bf16.mxu0 0
    %126 = vmatpush1.bf16.msra.mxu0 0
    %127 = vmatprep.subr.bf16.mxu0 0
    %128 = vmatpush1.bf16.msra.mxu0 0
    %129 = vmatprep.mubr.bf16.mxu0 0
    %130 = vmatmul.mubr.bf16.gmra.mrb[0].mxu0 %v27
    %v131 = vpop.f32.mrb[0].mxu0
    %v132 = vadd.f32 %v48, %v131
    %v133 = vpop.f32.mrb[0].mxu0
    %v134 = vpop.f32.mrb[0].mxu0
    %v135 = vadd.f32 %v48, %v134
    %v136 = vpop.f32.mrb[0].mxu0
    %137 = vdwg.mxu0
    %v138 = vpack.c.bf16 %v135, %v132
    %v139 = vld [vmem:[%s2] sm:$0xf]
    %v140 = vld [vmem:[%s2 + $0x4] sm:$0xf]
    %v141 = vld [vmem:[%s2 + $0x8] sm:$0xf]
    %v142 = vld [vmem:[%s2 + $0xc] sm:$0xf]
    %v143 = vld [vmem:[%s2 + $0x10] sm:$0xf]
    %v144 = vld [vmem:[%s2 + $0x14] sm:$0xf]
    %v145 = vld [vmem:[%s2 + $0x18] sm:$0xf]
    %v146 = vld [vmem:[%s2 + $0x1c] sm:$0xf]
    %v147 = vld [vmem:[%s2 + $0x20] sm:$0xf]
    %v148 = vld [vmem:[%s2 + $0x24] sm:$0xf]
    %v149 = vld [vmem:[%s2 + $0x28] sm:$0xf]
    %v150 = vld [vmem:[%s2 + $0x2c] sm:$0xf]
    %v151 = vld [vmem:[%s2 + $0x30] sm:$0xf]
    %v152 = vld [vmem:[%s2 + $0x34] sm:$0xf]
    %v153 = vld [vmem:[%s2 + $0x38] sm:$0xf]
    %v154 = vld [vmem:[%s2 + $0x3c] sm:$0xf]
    %v155 = vld [vmem:[%s4 + $0x1] sm:$0x1]
    %v156 = vlaneseq
    %v157 = vshrl.u32 %v156, 7
    %v158 = vsub.s32 0, %v157
    %v159 = vrot.slane %v155, %v158
    %v176 = vunpack.c.l.b16 %v139
    %v177 = vunpack.c.l.b16 %v140
    %v178 = vunpack.c.l.b16 %v141
    %v179 = vunpack.c.l.b16 %v142
    %v180 = vunpack.c.l.b16 %v143
    %v181 = vunpack.c.l.b16 %v144
    %v182 = vunpack.c.l.b16 %v145
    %v183 = vunpack.c.l.b16 %v146
    %v184 = vunpack.c.l.b16 %v147
    %v185 = vunpack.c.l.b16 %v148
    %v186 = vunpack.c.l.b16 %v149
    %v187 = vunpack.c.l.b16 %v150
    %v188 = vunpack.c.l.b16 %v151
    %v189 = vunpack.c.l.b16 %v152
    %v190 = vunpack.c.l.b16 %v153
    %v191 = vunpack.c.l.b16 %v154
    %v192 = vpack.c.b16 %v177, %v176
    %v193 = vpack.c.b16 %v179, %v178
    %v194 = vpack.c.b16 %v181, %v180
    %v195 = vpack.c.b16 %v183, %v182
    %v196 = vpack.c.b16 %v185, %v184
    %v197 = vpack.c.b16 %v187, %v186
    %v198 = vpack.c.b16 %v189, %v188
    %v199 = vpack.c.b16 %v191, %v190
    %208 = vmatprep.subr.bf16.mxu0 0
    %209 = vmatpush1.bf16.msra.mxu0 %v192
    %210 = vmatprep.subr.bf16.mxu0 0
    %211 = vmatpush1.bf16.msra.mxu0 %v193
    %212 = vmatprep.subr.bf16.mxu0 0
    %213 = vmatpush1.bf16.msra.mxu0 %v194
    %214 = vmatprep.subr.bf16.mxu0 0
    %215 = vmatpush1.bf16.msra.mxu0 %v195
    %216 = vmatprep.subr.bf16.mxu0 0
    %217 = vmatpush1.bf16.msra.mxu0 %v196
    %218 = vmatprep.subr.bf16.mxu0 0
    %219 = vmatpush1.bf16.msra.mxu0 %v197
    %220 = vmatprep.subr.bf16.mxu0 0
    %221 = vmatpush1.bf16.msra.mxu0 %v198
    %222 = vmatprep.subr.bf16.mxu0 0
    %223 = vmatpush1.bf16.msra.mxu0 %v199
    %224 = vmatprep.subr.bf16.mxu0 0
    %225 = vmatpush1.bf16.msra.mxu0 0
    %226 = vmatprep.subr.bf16.mxu0 0
    %227 = vmatpush1.bf16.msra.mxu0 0
    %228 = vmatprep.subr.bf16.mxu0 0
    %229 = vmatpush1.bf16.msra.mxu0 0
    %230 = vmatprep.subr.bf16.mxu0 0
    %231 = vmatpush1.bf16.msra.mxu0 0
    %232 = vmatprep.subr.bf16.mxu0 0
    %233 = vmatpush1.bf16.msra.mxu0 0
    %234 = vmatprep.subr.bf16.mxu0 0
    %235 = vmatpush1.bf16.msra.mxu0 0
    %236 = vmatprep.subr.bf16.mxu0 0
    %237 = vmatpush1.bf16.msra.mxu0 0
    %238 = vmatprep.subr.bf16.mxu0 0
    %239 = vmatpush1.bf16.msra.mxu0 0
    %240 = vmatprep.mubr.bf16.mxu0 0
    %241 = vmatmul.mubr.bf16.gmra.mrb[0].mxu0 %v138
    %v242 = vpop.f32.mrb[0].mxu0
    %v243 = vadd.f32 %v159, %v242
    %v244 = vpop.f32.mrb[0].mxu0
    %v245 = vpop.f32.mrb[0].mxu0
    %v246 = vadd.f32 %v159, %v245
    %v247 = vpop.f32.mrb[0].mxu0
    %248 = vdwg.mxu0
    %v249 = vmax.f32 %v243, 0.0
    %v250 = vmax.f32 %v246, 0.0
    %v251 = vpack.c.bf16 %v250, %v249
    %v252 = vld [vmem:[%s3] sm:$0xf]
    %v253 = vld [vmem:[%s3 + $0x4] sm:$0xf]
    %v254 = vld [vmem:[%s3 + $0x8] sm:$0xf]
    %v255 = vld [vmem:[%s3 + $0xc] sm:$0xf]
    %v256 = vld [vmem:[%s3 + $0x10] sm:$0xf]
    %v257 = vld [vmem:[%s3 + $0x14] sm:$0xf]
    %v258 = vld [vmem:[%s3 + $0x18] sm:$0xf]
    %v259 = vld [vmem:[%s3 + $0x1c] sm:$0xf]
    %v260 = vld [vmem:[%s3 + $0x20] sm:$0xf]
    %v261 = vld [vmem:[%s3 + $0x24] sm:$0xf]
    %v262 = vld [vmem:[%s3 + $0x28] sm:$0xf]
    %v263 = vld [vmem:[%s3 + $0x2c] sm:$0xf]
    %v264 = vld [vmem:[%s3 + $0x30] sm:$0xf]
    %v265 = vld [vmem:[%s3 + $0x34] sm:$0xf]
    %v266 = vld [vmem:[%s3 + $0x38] sm:$0xf]
    %v267 = vld [vmem:[%s3 + $0x3c] sm:$0xf]
    %v268 = vld [vmem:[%s5] sm:$0x1]
    %v270 = vlaneseq
    %v271 = vshrl.u32 %v270, 7
    %v272 = vsub.s32 0, %v271
    %v273 = vrot.slane %v268, %v272
    %v291 = vunpack.c.l.b16 %v252
    %v292 = vunpack.c.l.b16 %v253
    %v293 = vunpack.c.l.b16 %v254
    %v294 = vunpack.c.l.b16 %v255
    %v295 = vunpack.c.l.b16 %v256
    %v296 = vunpack.c.l.b16 %v257
    %v297 = vunpack.c.l.b16 %v258
    %v298 = vunpack.c.l.b16 %v259
    %v299 = vunpack.c.l.b16 %v260
    %v300 = vunpack.c.l.b16 %v261
    %v301 = vunpack.c.l.b16 %v262
    %v302 = vunpack.c.l.b16 %v263
    %v303 = vunpack.c.l.b16 %v264
    %v304 = vunpack.c.l.b16 %v265
    %v305 = vunpack.c.l.b16 %v266
    %v306 = vunpack.c.l.b16 %v267
    %v307 = vpack.c.b16 %v292, %v291
    %v308 = vpack.c.b16 %v294, %v293
    %v309 = vpack.c.b16 %v296, %v295
    %v310 = vpack.c.b16 %v298, %v297
    %v311 = vpack.c.b16 %v300, %v299
    %v312 = vpack.c.b16 %v302, %v301
    %v313 = vpack.c.b16 %v304, %v303
    %v314 = vpack.c.b16 %v306, %v305
    %323 = vmatprep.subr.bf16.mxu0 0
    %324 = vmatpush1.bf16.msra.mxu0 %v307
    %325 = vmatprep.subr.bf16.mxu0 0
    %326 = vmatpush1.bf16.msra.mxu0 %v308
    %327 = vmatprep.subr.bf16.mxu0 0
    %328 = vmatpush1.bf16.msra.mxu0 %v309
    %329 = vmatprep.subr.bf16.mxu0 0
    %330 = vmatpush1.bf16.msra.mxu0 %v310
    %331 = vmatprep.subr.bf16.mxu0 0
    %332 = vmatpush1.bf16.msra.mxu0 %v311
    %333 = vmatprep.subr.bf16.mxu0 0
    %334 = vmatpush1.bf16.msra.mxu0 %v312
    %335 = vmatprep.subr.bf16.mxu0 0
    %336 = vmatpush1.bf16.msra.mxu0 %v313
    %337 = vmatprep.subr.bf16.mxu0 0
    %338 = vmatpush1.bf16.msra.mxu0 %v314
    %339 = vmatprep.subr.bf16.mxu0 0
    %340 = vmatpush1.bf16.msra.mxu0 0
    %341 = vmatprep.subr.bf16.mxu0 0
    %342 = vmatpush1.bf16.msra.mxu0 0
    %343 = vmatprep.subr.bf16.mxu0 0
    %344 = vmatpush1.bf16.msra.mxu0 0
    %345 = vmatprep.subr.bf16.mxu0 0
    %346 = vmatpush1.bf16.msra.mxu0 0
    %347 = vmatprep.subr.bf16.mxu0 0
    %348 = vmatpush1.bf16.msra.mxu0 0
    %349 = vmatprep.subr.bf16.mxu0 0
    %350 = vmatpush1.bf16.msra.mxu0 0
    %351 = vmatprep.subr.bf16.mxu0 0
    %352 = vmatpush1.bf16.msra.mxu0 0
    %353 = vmatprep.subr.bf16.mxu0 0
    %354 = vmatpush1.bf16.msra.mxu0 0
    %355 = vmatprep.mubr.bf16.mxu0 0
    %356 = vmatmul.mubr.bf16.gmra.mrb[0].mxu0 %v251
    %v357 = vpop.f32.mrb[0].mxu0
    %v358 = vadd.f32 %v273, %v357
    %v359 = vpop.f32.mrb[0].mxu0
    %v360 = vpop.f32.mrb[0].mxu0
    %v361 = vadd.f32 %v273, %v360
    %v362 = vpop.f32.mrb[0].mxu0
    %363 = vdwg.mxu0
    %364 = vst [vmem:[#allocation2] sm:$0xff] %v358
    %365 = vst [vmem:[#allocation2 + $0x8] sm:$0xff] %v361
    // Predicated region
    $region26: #{_forward.1} parent=1 // pred_check
      _
    $region27: #{_forward.1} parent=1 // pred_check_branch
      %367 = sbr.rel (0) target = $region29
    $region28: #{_forward.1} parent=1 // pred_region
      %s369 = ssub.s32 256, 256
      %370 = vsyncadd [#allocation3], %s369
      %s371 = sshll.u32 [#allocation2], 4
      %s372 = int_to_ptr.vmem [resolvable:$true] %s371
      %377 = dma.vmem_to_hbm [thread:$0]  %s372, 256, %s6, [#allocation3], 128, 128, 8
    $region29: #{_forward.1} parent=1 // pred_fallthru
      _
    // Predicated region
    $region30: #{_forward.1} parent=1 // pred_check
      _
    $region31: #{_forward.1} parent=1 // pred_check_branch
      %379 = sbr.rel (0) target = $region33
    $region32: #{_forward.1} parent=1 // pred_region
      %380 = dma.done [#allocation3], 256
    $region33: #{_forward.1} parent=1 // pred_fallthru
      _
    %381 = vsyncpa [#allocation3], 1

// kernel: _forward.1
$region0: #{_forward.1}
  #allocation0 [shape = 'u32[]', space=smem, size = 0x4, offset = 0x4, fixed_abs, tag = 'smem constant byte address 0x4 - core index']
  #allocation1 [shape = 'u32[144,128]{1,0:T(1,128)}', space=vmem, size = 0x12000, scoped, tag = 'internal scratch']
  %s0 = inlined_call_operand.vmem [shape: f32[16,128], index: 0, kind: input, shape index: {}]
  %s1 = inlined_call_operand.vmem [shape: bf16[128,128], index: 1, kind: input, shape index: {}]
  %s2 = inlined_call_operand.vmem [shape: bf16[128,128], index: 2, kind: input, shape index: {}]
  %s3 = inlined_call_operand.vmem [shape: bf16[128,128], index: 3, kind: input, shape index: {}]
  %s4 = inlined_call_operand.vmem [shape: f32[2,128], index: 4, kind: input, shape index: {}]
  %s5 = inlined_call_operand.vmem [shape: f32[1,128], index: 5, kind: input, shape index: {}]
  %s6 = inlined_call_operand.hbm [shape: f32[16,128], index: 6, kind: output, shape index: {}]
  %s7 = sld [smem:[#allocation0]]
  $region34: #{_forward.1} parent=0
    _
  %s9 = ssub.s32 1, %s7
  %s10 = scalar_select 0, %s9, %s7
  $region1: #{_forward.1} parent=0
    #allocation2 [shape = 'u8[8192]{0}', space=vmem, size = 0x2000, scoped, tag = 'output window, operand 0, single buffered']
    #allocation3 [shape = 's32[1]{0}', space=sflag, size = 0x4, scoped, tag = 'scoped memory for _forward.1']
    %11 = vsyncpa [#allocation3], 0
    // Predicated region
    $region2: #{_forward.1} parent=1 // pred_check
      _
    $region3: #{_forward.1} parent=1 // pred_check_branch
      %13 = sbr.rel (0) target = $region5
    $region4: #{_forward.1} parent=1 // pred_region
      _
    $region5: #{_forward.1} parent=1 // pred_fallthru
      _
    // Predicated region
    $region6: #{_forward.1} parent=1 // pred_check
      _
    $region7: #{_forward.1} parent=1 // pred_check_branch
      %15 = sbr.rel (0) target = $region9
    $region8: #{_forward.1} parent=1 // pred_region
      _
    $region9: #{_forward.1} parent=1 // pred_fallthru
      _
    // Predicated region
    $region10: #{_forward.1} parent=1 // pred_check
      _
    $region11: #{_forward.1} parent=1 // pred_check_branch
      %17 = sbr.rel (0) target = $region13
    $region12: #{_forward.1} parent=1 // pred_region
      _
    $region13: #{_forward.1} parent=1 // pred_fallthru
      _
    // Predicated region
    $region14: #{_forward.1} parent=1 // pred_check
      _
    $region15: #{_forward.1} parent=1 // pred_check_branch
      %19 = sbr.rel (0) target = $region17
    $region16: #{_forward.1} parent=1 // pred_region
      _
    $region17: #{_forward.1} parent=1 // pred_fallthru
      _
    // Predicated region
    $region18: #{_forward.1} parent=1 // pred_check
      _
    $region19: #{_forward.1} parent=1 // pred_check_branch
      %21 = sbr.rel (0) target = $region21
    $region20: #{_forward.1} parent=1 // pred_region
      _
    $region21: #{_forward.1} parent=1 // pred_fallthru
      _
    // Predicated region
    $region22: #{_forward.1} parent=1 // pred_check
      _
    $region23: #{_forward.1} parent=1 // pred_check_branch
      %23 = sbr.rel (0) target = $region25
    $region24: #{_forward.1} parent=1 // pred_region
      _
    $region25: #{_forward.1} parent=1 // pred_fallthru
      _
    %v25 = vld [vmem:[%s0] sm:$0xff]
    %v26 = vld [vmem:[%s0 + $0x8] sm:$0xff]
    %v27 = vpack.c.bf16 %v26, %v25
    %v28 = vld [vmem:[%s1] sm:$0xf]
    %v29 = vld [vmem:[%s1 + $0x4] sm:$0xf]
    %v30 = vld [vmem:[%s1 + $0x8] sm:$0xf]
    %v31 = vld [vmem:[%s1 + $0xc] sm:$0xf]
    %v32 = vld [vmem:[%s1 + $0x10] sm:$0xf]
    %v33 = vld [vmem:[%s1 + $0x14] sm:$0xf]
    %v34 = vld [vmem:[%s1 + $0x18] sm:$0xf]
    %v35 = vld [vmem:[%s1 + $0x1c] sm:$0xf]
    %v36 = vld [vmem:[%s1 + $0x20] sm:$0xf]
    %v37 = vld [vmem:[%s1 + $0x24] sm:$0xf]
    %v38 = vld [vmem:[%s1 + $0x28] sm:$0xf]
    %v39 = vld [vmem:[%s1 + $0x2c] sm:$0xf]
    %v40 = vld [vmem:[%s1 + $0x30] sm:$0xf]
    %v41 = vld [vmem:[%s1 + $0x34] sm:$0xf]
    %v42 = vld [vmem:[%s1 + $0x38] sm:$0xf]
    %v43 = vld [vmem:[%s1 + $0x3c] sm:$0xf]
    %v44 = vld [vmem:[%s4] sm:$0x1]
    %v45 = vlaneseq
    %v46 = vshrl.u32 %v45, 7
    %v47 = vsub.s32 0, %v46
    %v48 = vrot.slane %v44, %v47
    %v65 = vunpack.c.l.b16 %v28
    %v66 = vunpack.c.l.b16 %v29
    %v67 = vunpack.c.l.b16 %v30
    %v68 = vunpack.c.l.b16 %v31
    %v69 = vunpack.c.l.b16 %v32
    %v70 = vunpack.c.l.b16 %v33
    %v71 = vunpack.c.l.b16 %v34
    %v72 = vunpack.c.l.b16 %v35
    %v73 = vunpack.c.l.b16 %v36
    %v74 = vunpack.c.l.b16 %v37
    %v75 = vunpack.c.l.b16 %v38
    %v76 = vunpack.c.l.b16 %v39
    %v77 = vunpack.c.l.b16 %v40
    %v78 = vunpack.c.l.b16 %v41
    %v79 = vunpack.c.l.b16 %v42
    %v80 = vunpack.c.l.b16 %v43
    %v81 = vpack.c.b16 %v66, %v65
    %v82 = vpack.c.b16 %v68, %v67
    %v83 = vpack.c.b16 %v70, %v69
    %v84 = vpack.c.b16 %v72, %v71
    %v85 = vpack.c.b16 %v74, %v73
    %v86 = vpack.c.b16 %v76, %v75
    %v87 = vpack.c.b16 %v78, %v77
    %v88 = vpack.c.b16 %v80, %v79
    %97 = vmatprep.subr.bf16.mxu0 0
    %98 = vmatpush1.bf16.msra.mxu0 %v81
    %99 = vmatprep.subr.bf16.mxu0 0
    %100 = vmatpush1.bf16.msra.mxu0 %v82
    %101 = vmatprep.subr.bf16.mxu0 0
    %102 = vmatpush1.bf16.msra.mxu0 %v83
    %103 = vmatprep.subr.bf16.mxu0 0
    %104 = vmatpush1.bf16.msra.mxu0 %v84
    %105 = vmatprep.subr.bf16.mxu0 0
    %106 = vmatpush1.bf16.msra.mxu0 %v85
    %107 = vmatprep.subr.bf16.mxu0 0
    %108 = vmatpush1.bf16.msra.mxu0 %v86
    %109 = vmatprep.subr.bf16.mxu0 0
    %110 = vmatpush1.bf16.msra.mxu0 %v87
    %111 = vmatprep.subr.bf16.mxu0 0
    %112 = vmatpush1.bf16.msra.mxu0 %v88
    %113 = vmatprep.subr.bf16.mxu0 0
    %114 = vmatpush1.bf16.msra.mxu0 0
    %115 = vmatprep.subr.bf16.mxu0 0
    %116 = vmatpush1.bf16.msra.mxu0 0
    %117 = vmatprep.subr.bf16.mxu0 0
    %118 = vmatpush1.bf16.msra.mxu0 0
    %119 = vmatprep.subr.bf16.mxu0 0
    %120 = vmatpush1.bf16.msra.mxu0 0
    %121 = vmatprep.subr.bf16.mxu0 0
    %122 = vmatpush1.bf16.msra.mxu0 0
    %123 = vmatprep.subr.bf16.mxu0 0
    %124 = vmatpush1.bf16.msra.mxu0 0
    %125 = vmatprep.subr.bf16.mxu0 0
    %126 = vmatpush1.bf16.msra.mxu0 0
    %127 = vmatprep.subr.bf16.mxu0 0
    %128 = vmatpush1.bf16.msra.mxu0 0
    %129 = vmatprep.mubr.bf16.mxu0 0
    %130 = vmatmul.mubr.bf16.gmra.mrb[0].mxu0 %v27
    %v131 = vpop.f32.mrb[0].mxu0
    %v132 = vadd.f32 %v48, %v131
    %v133 = vpop.f32.mrb[0].mxu0
    %v134 = vpop.f32.mrb[0].mxu0
    %v135 = vadd.f32 %v48, %v134
    %v136 = vpop.f32.mrb[0].mxu0
    %137 = vdwg.mxu0
    %v138 = vpack.c.bf16 %v135, %v132
    %v139 = vld [vmem:[%s2] sm:$0xf]
    %v140 = vld [vmem:[%s2 + $0x4] sm:$0xf]
    %v141 = vld [vmem:[%s2 + $0x8] sm:$0xf]
    %v142 = vld [vmem:[%s2 + $0xc] sm:$0xf]
    %v143 = vld [vmem:[%s2 + $0x10] sm:$0xf]
    %v144 = vld [vmem:[%s2 + $0x14] sm:$0xf]
    %v145 = vld [vmem:[%s2 + $0x18] sm:$0xf]
    %v146 = vld [vmem:[%s2 + $0x1c] sm:$0xf]
    %v147 = vld [vmem:[%s2 + $0x20] sm:$0xf]
    %v148 = vld [vmem:[%s2 + $0x24] sm:$0xf]
    %v149 = vld [vmem:[%s2 + $0x28] sm:$0xf]
    %v150 = vld [vmem:[%s2 + $0x2c] sm:$0xf]
    %v151 = vld [vmem:[%s2 + $0x30] sm:$0xf]
    %v152 = vld [vmem:[%s2 + $0x34] sm:$0xf]
    %v153 = vld [vmem:[%s2 + $0x38] sm:$0xf]
    %v154 = vld [vmem:[%s2 + $0x3c] sm:$0xf]
    %v155 = vld [vmem:[%s4 + $0x1] sm:$0x1]
    %v156 = vlaneseq
    %v157 = vshrl.u32 %v156, 7
    %v158 = vsub.s32 0, %v157
    %v159 = vrot.slane %v155, %v158
    %v176 = vunpack.c.l.b16 %v139
    %v177 = vunpack.c.l.b16 %v140
    %v178 = vunpack.c.l.b16 %v141
    %v179 = vunpack.c.l.b16 %v142
    %v180 = vunpack.c.l.b16 %v143
    %v181 = vunpack.c.l.b16 %v144
    %v182 = vunpack.c.l.b16 %v145
    %v183 = vunpack.c.l.b16 %v146
    %v184 = vunpack.c.l.b16 %v147
    %v185 = vunpack.c.l.b16 %v148
    %v186 = vunpack.c.l.b16 %v149
    %v187 = vunpack.c.l.b16 %v150
    %v188 = vunpack.c.l.b16 %v151
    %v189 = vunpack.c.l.b16 %v152
    %v190 = vunpack.c.l.b16 %v153
    %v191 = vunpack.c.l.b16 %v154
    %v192 = vpack.c.b16 %v177, %v176
    %v193 = vpack.c.b16 %v179, %v178
    %v194 = vpack.c.b16 %v181, %v180
    %v195 = vpack.c.b16 %v183, %v182
    %v196 = vpack.c.b16 %v185, %v184
    %v197 = vpack.c.b16 %v187, %v186
    %v198 = vpack.c.b16 %v189, %v188
    %v199 = vpack.c.b16 %v191, %v190
    %208 = vmatprep.subr.bf16.mxu0 0
    %209 = vmatpush1.bf16.msra.mxu0 %v192
    %210 = vmatprep.subr.bf16.mxu0 0
    %211 = vmatpush1.bf16.msra.mxu0 %v193
    %212 = vmatprep.subr.bf16.mxu0 0
    %213 = vmatpush1.bf16.msra.mxu0 %v194
    %214 = vmatprep.subr.bf16.mxu0 0
    %215 = vmatpush1.bf16.msra.mxu0 %v195
    %216 = vmatprep.subr.bf16.mxu0 0
    %217 = vmatpush1.bf16.msra.mxu0 %v196
    %218 = vmatprep.subr.bf16.mxu0 0
    %219 = vmatpush1.bf16.msra.mxu0 %v197
    %220 = vmatprep.subr.bf16.mxu0 0
    %221 = vmatpush1.bf16.msra.mxu0 %v198
    %222 = vmatprep.subr.bf16.mxu0 0
    %223 = vmatpush1.bf16.msra.mxu0 %v199
    %224 = vmatprep.subr.bf16.mxu0 0
    %225 = vmatpush1.bf16.msra.mxu0 0
    %226 = vmatprep.subr.bf16.mxu0 0
    %227 = vmatpush1.bf16.msra.mxu0 0
    %228 = vmatprep.subr.bf16.mxu0 0
    %229 = vmatpush1.bf16.msra.mxu0 0
    %230 = vmatprep.subr.bf16.mxu0 0
    %231 = vmatpush1.bf16.msra.mxu0 0
    %232 = vmatprep.subr.bf16.mxu0 0
    %233 = vmatpush1.bf16.msra.mxu0 0
    %234 = vmatprep.subr.bf16.mxu0 0
    %235 = vmatpush1.bf16.msra.mxu0 0
    %236 = vmatprep.subr.bf16.mxu0 0
    %237 = vmatpush1.bf16.msra.mxu0 0
    %238 = vmatprep.subr.bf16.mxu0 0
    %239 = vmatpush1.bf16.msra.mxu0 0
    %240 = vmatprep.mubr.bf16.mxu0 0
    %241 = vmatmul.mubr.bf16.gmra.mrb[0].mxu0 %v138
    %v242 = vpop.f32.mrb[0].mxu0
    %v243 = vadd.f32 %v159, %v242
    %v244 = vpop.f32.mrb[0].mxu0
    %v245 = vpop.f32.mrb[0].mxu0
    %v246 = vadd.f32 %v159, %v245
    %v247 = vpop.f32.mrb[0].mxu0
    %248 = vdwg.mxu0
    %v249 = vmax.f32 %v243, 0.0
    %v250 = vmax.f32 %v246, 0.0
    %v251 = vpack.c.bf16 %v250, %v249
    %v252 = vld [vmem:[%s3] sm:$0xf]
    %v253 = vld [vmem:[%s3 + $0x4] sm:$0xf]
    %v254 = vld [vmem:[%s3 + $0x8] sm:$0xf]
    %v255 = vld [vmem:[%s3 + $0xc] sm:$0xf]
    %v256 = vld [vmem:[%s3 + $0x10] sm:$0xf]
    %v257 = vld [vmem:[%s3 + $0x14] sm:$0xf]
    %v258 = vld [vmem:[%s3 + $0x18] sm:$0xf]
    %v259 = vld [vmem:[%s3 + $0x1c] sm:$0xf]
    %v260 = vld [vmem:[%s3 + $0x20] sm:$0xf]
    %v261 = vld [vmem:[%s3 + $0x24] sm:$0xf]
    %v262 = vld [vmem:[%s3 + $0x28] sm:$0xf]
    %v263 = vld [vmem:[%s3 + $0x2c] sm:$0xf]
    %v264 = vld [vmem:[%s3 + $0x30] sm:$0xf]
    %v265 = vld [vmem:[%s3 + $0x34] sm:$0xf]
    %v266 = vld [vmem:[%s3 + $0x38] sm:$0xf]
    %v267 = vld [vmem:[%s3 + $0x3c] sm:$0xf]
    %v268 = vld [vmem:[%s5] sm:$0x1]
    %v270 = vlaneseq
    %v271 = vshrl.u32 %v270, 7
    %v272 = vsub.s32 0, %v271
    %v273 = vrot.slane %v268, %v272
    %v291 = vunpack.c.l.b16 %v252
    %v292 = vunpack.c.l.b16 %v253
    %v293 = vunpack.c.l.b16 %v254
    %v294 = vunpack.c.l.b16 %v255
    %v295 = vunpack.c.l.b16 %v256
    %v296 = vunpack.c.l.b16 %v257
    %v297 = vunpack.c.l.b16 %v258
    %v298 = vunpack.c.l.b16 %v259
    %v299 = vunpack.c.l.b16 %v260
    %v300 = vunpack.c.l.b16 %v261
    %v301 = vunpack.c.l.b16 %v262
    %v302 = vunpack.c.l.b16 %v263
    %v303 = vunpack.c.l.b16 %v264
    %v304 = vunpack.c.l.b16 %v265
    %v305 = vunpack.c.l.b16 %v266
    %v306 = vunpack.c.l.b16 %v267
    %v307 = vpack.c.b16 %v292, %v291
    %v308 = vpack.c.b16 %v294, %v293
    %v309 = vpack.c.b16 %v296, %v295
    %v310 = vpack.c.b16 %v298, %v297
    %v311 = vpack.c.b16 %v300, %v299
    %v312 = vpack.c.b16 %v302, %v301
    %v313 = vpack.c.b16 %v304, %v303
    %v314 = vpack.c.b16 %v306, %v305
    %323 = vmatprep.subr.bf16.mxu0 0
    %324 = vmatpush1.bf16.msra.mxu0 %v307
    %325 = vmatprep.subr.bf16.mxu0 0
    %326 = vmatpush1.bf16.msra.mxu0 %v308
    %327 = vmatprep.subr.bf16.mxu0 0
    %328 = vmatpush1.bf16.msra.mxu0 %v309
    %329 = vmatprep.subr.bf16.mxu0 0
    %330 = vmatpush1.bf16.msra.mxu0 %v310
    %331 = vmatprep.subr.bf16.mxu0 0
    %332 = vmatpush1.bf16.msra.mxu0 %v311
    %333 = vmatprep.subr.bf16.mxu0 0
    %334 = vmatpush1.bf16.msra.mxu0 %v312
    %335 = vmatprep.subr.bf16.mxu0 0
    %336 = vmatpush1.bf16.msra.mxu0 %v313
    %337 = vmatprep.subr.bf16.mxu0 0
    %338 = vmatpush1.bf16.msra.mxu0 %v314
    %339 = vmatprep.subr.bf16.mxu0 0
    %340 = vmatpush1.bf16.msra.mxu0 0
    %341 = vmatprep.subr.bf16.mxu0 0
    %342 = vmatpush1.bf16.msra.mxu0 0
    %343 = vmatprep.subr.bf16.mxu0 0
    %344 = vmatpush1.bf16.msra.mxu0 0
    %345 = vmatprep.subr.bf16.mxu0 0
    %346 = vmatpush1.bf16.msra.mxu0 0
    %347 = vmatprep.subr.bf16.mxu0 0
    %348 = vmatpush1.bf16.msra.mxu0 0
    %349 = vmatprep.subr.bf16.mxu0 0
    %350 = vmatpush1.bf16.msra.mxu0 0
    %351 = vmatprep.subr.bf16.mxu0 0
    %352 = vmatpush1.bf16.msra.mxu0 0
    %353 = vmatprep.subr.bf16.mxu0 0
    %354 = vmatpush1.bf16.msra.mxu0 0
    %355 = vmatprep.mubr.bf16.mxu0 0
    %356 = vmatmul.mubr.bf16.gmra.mrb[0].mxu0 %v251
    %v357 = vpop.f32.mrb[0].mxu0
    %v358 = vadd.f32 %v273, %v357
    %v359 = vpop.f32.mrb[0].mxu0
    %v360 = vpop.f32.mrb[0].mxu0
    %v361 = vadd.f32 %v273, %v360
    %v362 = vpop.f32.mrb[0].mxu0
    %363 = vdwg.mxu0
    %364 = vst [vmem:[#allocation2] sm:$0xff] %v358
    %365 = vst [vmem:[#allocation2 + $0x8] sm:$0xff] %v361
    // Predicated region
    $region26: #{_forward.1} parent=1 // pred_check
      _
    $region27: #{_forward.1} parent=1 // pred_check_branch
      %367 = sbr.rel (0) target = $region29
    $region28: #{_forward.1} parent=1 // pred_region
      %s369 = ssub.s32 256, 256
      %370 = vsyncadd [#allocation3], %s369
      %s371 = sshll.u32 [#allocation2], 4
      %s372 = int_to_ptr.vmem [resolvable:$true] %s371
      %377 = dma.vmem_to_hbm [thread:$0]  %s372, 256, %s6, [#allocation3], 128, 128, 8
    $region29: #{_forward.1} parent=1 // pred_fallthru
      _
    // Predicated region
    $region30: #{_forward.1} parent=1 // pred_check
      _
    $region31: #{_forward.1} parent=1 // pred_check_branch
      %379 = sbr.rel (0) target = $region33
    $region32: #{_forward.1} parent=1 // pred_region
      %380 = dma.done [#allocation3], 256
    $region33: #{_forward.1} parent=1 // pred_fallthru
      _
    %381 = vsyncpa [#allocation3], 1

</llo_original>
